<compile_context>
chip_gen: v7x
topology: tpu7x:2x2x1
jax: 0.10.0
libtpu: 0.0.40
codegen_flags: <defaults>
</compile_context>

<pallas_src>
import functools

import jax
import jax.numpy as jnp
from jax.experimental import pallas as pl
from jax.experimental.pallas import tpu as pltpu

_SUBLANE = 8  # inputs/outputs stay in their HBM dtype (f32) -> 8-row sublane granule


def dynamics_mlp_kernel(s_ref, a_ref, w1s_ref, w1a_ref, b1_ref,
                        w2_ref, b2_ref, w3_ref, b3_ref, o_ref, *, compute_dtype):
    """Fused 3-layer MLP forward for one batch tile (all operands in VMEM).

    Layer 1 is concat-free: x @ W1 == s @ W1_s + a @ W1_a.  Matmul operands are
    cast to `compute_dtype` in-kernel; accumulation, bias-add and ReLU stay f32.
    """
    s = s_ref[...].astype(compute_dtype)
    a = a_ref[...].astype(compute_dtype)

    # TODO(synk): fuse layer 1 into a single dot (in-kernel concat via roll +
    # masked store) only if bundle analysis shows the MXU-push slot binding.
    h1 = (jnp.dot(s, w1s_ref[...], preferred_element_type=jnp.float32)
          + jnp.dot(a, w1a_ref[...], preferred_element_type=jnp.float32)
          + b1_ref[...].astype(jnp.float32))
    h1 = jnp.maximum(h1, 0.0)                                          # relu (f32, VPU)

    h2 = (jnp.dot(h1.astype(compute_dtype), w2_ref[...],
                  preferred_element_type=jnp.float32)
          + b2_ref[...].astype(jnp.float32))
    h2 = jnp.maximum(h2, 0.0)                                          # relu

    out = (jnp.dot(h2.astype(compute_dtype), w3_ref[...],
                   preferred_element_type=jnp.float32)
           + b3_ref[...].astype(jnp.float32))
    o_ref[...] = out.astype(o_ref.dtype)


def _round_up(x, m):
    return ((x + m - 1) // m) * m


@functools.partial(jax.jit, static_argnames=("tile_b", "compute_dtype"))
def dynamics_net_mlp_forward(s, a, params, *, tile_b=1024, compute_dtype=jnp.bfloat16):
    """Pallas-backed forward pass. s: [B, state_dim], a: [B, act_dim]."""
    assert s.ndim == a.ndim, "State and action inputs should be of the same size"
    w1, b1, w2, b2, w3, b3 = params

    B, state_dim = s.shape
    act_dim = a.shape[1]
    d_in = state_dim + act_dim
    h1_dim = w1.shape[1]
    h2_dim = w2.shape[1]
    d_out = w3.shape[1]
    out_dtype = s.dtype

    # Split W1 so the kernel never needs a concatenated [s, a] tensor; cast the
    # tiny, VMEM-resident weights to the matmul-operand dtype once here.  The
    # large s/a arrays are fed in their native dtype and cast in-kernel.
    w1s = w1[:state_dim, :].astype(compute_dtype)
    w1a = w1[state_dim:, :].astype(compute_dtype)
    w2c = w2.astype(compute_dtype)
    w3c = w3.astype(compute_dtype)

    # Batch tile: large enough to amortize the per-step fixed cost, capped at
    # ceil(B/2) so there are >=2 grid steps when B > 8 (both v7x TCs get work).
    # No padding/slicing: grid = cdiv(B, tb) and Pallas masks the partial edge
    # block writeback; rows are independent, so OOB-input garbage is harmless.
    half_b = _round_up(max((B + 1) // 2, 1), _SUBLANE)
    tb = max(min(_round_up(tile_b, _SUBLANE), half_b), _SUBLANE)
    grid = (pl.cdiv(B, tb),)

    const = lambda i: (0, 0)  # weights/biases: same block every step (held resident)

    w_items = jnp.dtype(compute_dtype).itemsize
    io_items = jnp.dtype(out_dtype).itemsize
    cost = pl.CostEstimate(
        flops=2 * B * (d_in * h1_dim + h1_dim * h2_dim + h2_dim * d_out),
        transcendentals=0,
        bytes_accessed=(B * (d_in + d_out) * io_items
                        + (d_in * h1_dim + h1_dim * h2_dim + h2_dim * d_out) * w_items
                        + (h1_dim + h2_dim + d_out) * jnp.dtype(b1.dtype).itemsize),
    )

    kernel = functools.partial(dynamics_mlp_kernel, compute_dtype=compute_dtype)

    # TODO(synk): weight/bias specs could be single-buffered (pipeline_mode=
    # pl.Buffered(1)); skipped — they total ~tens of KB so the VMEM win is noise.
    return pl.pallas_call(
        kernel,
        out_shape=jax.ShapeDtypeStruct((B, d_out), out_dtype),
        grid_spec=pl.GridSpec(
            grid=grid,
            in_specs=[
                pl.BlockSpec((tb, state_dim), lambda i: (i, 0)),     # s tile (per step)
                pl.BlockSpec((tb, act_dim), lambda i: (i, 0)),       # a tile (per step)
                pl.BlockSpec((state_dim, h1_dim), const),            # W1_s (resident)
                pl.BlockSpec((act_dim, h1_dim), const),              # W1_a (resident)
                pl.BlockSpec((1, h1_dim), const),                    # b1
                pl.BlockSpec((h1_dim, h2_dim), const),               # W2
                pl.BlockSpec((1, h2_dim), const),                    # b2
                pl.BlockSpec((h2_dim, d_out), const),                # W3
                pl.BlockSpec((1, d_out), const),                     # b3
            ],
            # TODO(synk): emit bf16 output / lane-pad d_out only if bundles show
            # the (tb, d_out) masked store binding; blanket padding to 128 lanes
            # would ~10x the HBM write volume.
            out_specs=pl.BlockSpec((tb, d_out), lambda i: (i, 0)),
        ),
        compiler_params=pltpu.CompilerParams(
            dimension_semantics=("parallel",),   # batch axis shardable across v7x's 2 TCs
        ),
        cost_estimate=cost,
    )(s, a, w1s, w1a, b1, w2c, b2, w3c, b3)


def init_params(key, state_dim, act_dim, hidden_sizes=(64, 64), dtype=jnp.float32):
    """Deterministic synthetic init (shapes match the PyTorch module's __init__)."""
    d_in = state_dim + act_dim
    dims = (d_in,) + tuple(hidden_sizes) + (state_dim,)
    params = []
    keys = jax.random.split(key, 2 * (len(dims) - 1))
    for li in range(len(dims) - 1):
        fan_in, fan_out = dims[li], dims[li + 1]
        bound = 1.0 / jnp.sqrt(jnp.array(fan_in, dtype))
        w = jax.random.uniform(keys[2 * li], (fan_in, fan_out), dtype, -bound, bound)
        b = jax.random.uniform(keys[2 * li + 1], (1, fan_out), dtype, -bound, bound)
        params += [w, b]
    return tuple(params)


def reference_forward(s, a, params):
    """Pure-JAX reference for correctness checking."""
    w1, b1, w2, b2, w3, b3 = params
    x = jnp.concatenate([s, a], axis=-1)
    h1 = jnp.maximum(x @ w1 + b1, 0.0)
    h2 = jnp.maximum(h1 @ w2 + b2, 0.0)
    return h2 @ w3 + b3


if __name__ == "__main__":
    key = jax.random.PRNGKey(0)
    k_s, k_a, k_p = jax.random.split(key, 3)

    batch, state_dim, act_dim = 16, 12, 4
    hidden_sizes = (64, 64)

    s = jax.random.normal(k_s, (batch, state_dim), jnp.float32)
    a = jax.random.normal(k_a, (batch, act_dim), jnp.float32)
    params = init_params(k_p, state_dim, act_dim, hidden_sizes)

    ref = reference_forward(s, a, params)

    # Default path: bf16 matmul operands (MXU-native), f32 accumulation & output.
    out_bf16 = jax.block_until_ready(dynamics_net_mlp_forward(s, a, params))
    assert out_bf16.shape == (batch, state_dim)
    assert out_bf16.dtype == s.dtype
    assert jnp.allclose(out_bf16, ref, atol=5e-2, rtol=5e-2), "bf16 path mismatch vs reference"

    # f32 matmul-operand path: tight correctness vs. reference.
    out_f32 = jax.block_until_ready(
        dynamics_net_mlp_forward(s, a, params, compute_dtype=jnp.float32))
    assert jnp.allclose(out_f32, ref, atol=1e-5, rtol=1e-5), "f32 path mismatch vs reference"

    # Ragged batch (13 rows): exercises the masked partial edge block (no pad/slice).
    out_odd = jax.block_until_ready(dynamics_net_mlp_forward(s[:13], a[:13], params))
    assert out_odd.shape == (13, state_dim)
    assert jnp.allclose(out_odd, ref[:13], atol=5e-2, rtol=5e-2), "ragged-batch mismatch"

    print("KERNEL_OK")
</pallas_src>

<mosaic_0001>
module attributes {stable_mosaic.version = 11 : i64} {
  func.func @dynamics_mlp_kernel(%arg0: i32, %arg1: memref<8x12xf32, #tpu.memory_space<vmem>>, %arg2: memref<8x4xf32, #tpu.memory_space<vmem>>, %arg3: memref<12x64xbf16, #tpu.memory_space<vmem>>, %arg4: memref<4x64xbf16, #tpu.memory_space<vmem>>, %arg5: memref<1x64xf32, #tpu.memory_space<vmem>>, %arg6: memref<64x64xbf16, #tpu.memory_space<vmem>>, %arg7: memref<1x64xf32, #tpu.memory_space<vmem>>, %arg8: memref<64x12xbf16, #tpu.memory_space<vmem>>, %arg9: memref<1x12xf32, #tpu.memory_space<vmem>>, %arg10: memref<8x12xf32, #tpu.memory_space<vmem>>) attributes {dimension_semantics = [#tpu.dimension_semantics<parallel>], iteration_bounds = array<i64: 2>, scalar_prefetch = 0 : i64, scratch_operands = 0 : i64, tpu.core_type = #tpu.core_type<tc>, window_params = [{transform_indices = @transform_0, window_bounds = array<i64: 8, 12>}, {transform_indices = @transform_1, window_bounds = array<i64: 8, 4>}, {pipeline_mode = #tpu.pipeline_mode<synchronous>, transform_indices = @transform_2, window_bounds = array<i64: 12, 64>}, {pipeline_mode = #tpu.pipeline_mode<synchronous>, transform_indices = @transform_3, window_bounds = array<i64: 4, 64>}, {pipeline_mode = #tpu.pipeline_mode<synchronous>, transform_indices = @transform_4, window_bounds = array<i64: 1, 64>}, {pipeline_mode = #tpu.pipeline_mode<synchronous>, transform_indices = @transform_5, window_bounds = array<i64: 64, 64>}, {pipeline_mode = #tpu.pipeline_mode<synchronous>, transform_indices = @transform_6, window_bounds = array<i64: 1, 64>}, {pipeline_mode = #tpu.pipeline_mode<synchronous>, transform_indices = @transform_7, window_bounds = array<i64: 64, 12>}, {pipeline_mode = #tpu.pipeline_mode<synchronous>, transform_indices = @transform_8, window_bounds = array<i64: 1, 12>}, {transform_indices = @transform_9, window_bounds = array<i64: 8, 12>}]} {
    %c0 = arith.constant 0 : index
    %c0_0 = arith.constant 0 : index
    %0 = vector.load %arg1[%c0, %c0_0] : memref<8x12xf32, #tpu.memory_space<vmem>>, vector<8x12xf32>
    %1 = arith.truncf %0 : vector<8x12xf32> to vector<8x12xbf16>
    %c0_1 = arith.constant 0 : index
    %c0_2 = arith.constant 0 : index
    %2 = vector.load %arg2[%c0_1, %c0_2] : memref<8x4xf32, #tpu.memory_space<vmem>>, vector<8x4xf32>
    %3 = arith.truncf %2 : vector<8x4xf32> to vector<8x4xbf16>
    %c0_3 = arith.constant 0 : index
    %c0_4 = arith.constant 0 : index
    %4 = vector.load %arg3[%c0_3, %c0_4] : memref<12x64xbf16, #tpu.memory_space<vmem>>, vector<12x64xbf16>
    %cst = arith.constant dense<0.000000e+00> : vector<8x64xf32>
    %5 = tpu.matmul %1, %4, %cst {dimension_numbers = #tpu.dot_dimension_numbers<[1], [0], [0], [1], [0, 0, 1, 1], [], []>} : vector<8x12xbf16>, vector<12x64xbf16>, vector<8x64xf32> -> vector<8x64xf32>
    %c0_5 = arith.constant 0 : index
    %c0_6 = arith.constant 0 : index
    %6 = vector.load %arg4[%c0_5, %c0_6] : memref<4x64xbf16, #tpu.memory_space<vmem>>, vector<4x64xbf16>
    %cst_7 = arith.constant dense<0.000000e+00> : vector<8x64xf32>
    %7 = tpu.matmul %3, %6, %cst_7 {dimension_numbers = #tpu.dot_dimension_numbers<[1], [0], [0], [1], [0, 0, 1, 1], [], []>} : vector<8x4xbf16>, vector<4x64xbf16>, vector<8x64xf32> -> vector<8x64xf32>
    %8 = arith.addf %5, %7 : vector<8x64xf32>
    %c0_8 = arith.constant 0 : index
    %c0_9 = arith.constant 0 : index
    %9 = vector.load %arg5[%c0_8, %c0_9] : memref<1x64xf32, #tpu.memory_space<vmem>>, vector<1x64xf32>
    %10 = vector.broadcast %9 : vector<1x64xf32> to vector<8x64xf32>
    %11 = arith.addf %8, %10 : vector<8x64xf32>
    %cst_10 = arith.constant 0.000000e+00 : f32
    %12 = vector.broadcast %cst_10 : f32 to vector<8x64xf32>
    %13 = arith.maximumf %11, %12 : vector<8x64xf32>
    %14 = arith.truncf %13 : vector<8x64xf32> to vector<8x64xbf16>
    %c0_11 = arith.constant 0 : index
    %c0_12 = arith.constant 0 : index
    %15 = vector.load %arg6[%c0_11, %c0_12] : memref<64x64xbf16, #tpu.memory_space<vmem>>, vector<64x64xbf16>
    %cst_13 = arith.constant dense<0.000000e+00> : vector<8x64xf32>
    %16 = tpu.matmul %14, %15, %cst_13 {dimension_numbers = #tpu.dot_dimension_numbers<[1], [0], [0], [1], [0, 0, 1, 1], [], []>} : vector<8x64xbf16>, vector<64x64xbf16>, vector<8x64xf32> -> vector<8x64xf32>
    %c0_14 = arith.constant 0 : index
    %c0_15 = arith.constant 0 : index
    %17 = vector.load %arg7[%c0_14, %c0_15] : memref<1x64xf32, #tpu.memory_space<vmem>>, vector<1x64xf32>
    %18 = vector.broadcast %17 : vector<1x64xf32> to vector<8x64xf32>
    %19 = arith.addf %16, %18 : vector<8x64xf32>
    %cst_16 = arith.constant 0.000000e+00 : f32
    %20 = vector.broadcast %cst_16 : f32 to vector<8x64xf32>
    %21 = arith.maximumf %19, %20 : vector<8x64xf32>
    %22 = arith.truncf %21 : vector<8x64xf32> to vector<8x64xbf16>
    %c0_17 = arith.constant 0 : index
    %c0_18 = arith.constant 0 : index
    %23 = vector.load %arg8[%c0_17, %c0_18] : memref<64x12xbf16, #tpu.memory_space<vmem>>, vector<64x12xbf16>
    %cst_19 = arith.constant dense<0.000000e+00> : vector<8x12xf32>
    %24 = tpu.matmul %22, %23, %cst_19 {dimension_numbers = #tpu.dot_dimension_numbers<[1], [0], [0], [1], [0, 0, 1, 1], [], []>} : vector<8x64xbf16>, vector<64x12xbf16>, vector<8x12xf32> -> vector<8x12xf32>
    %c0_20 = arith.constant 0 : index
    %c0_21 = arith.constant 0 : index
    %25 = vector.load %arg9[%c0_20, %c0_21] : memref<1x12xf32, #tpu.memory_space<vmem>>, vector<1x12xf32>
    %26 = vector.broadcast %25 : vector<1x12xf32> to vector<8x12xf32>
    %27 = arith.addf %24, %26 : vector<8x12xf32>
    %c0_22 = arith.constant 0 : index
    %c0_23 = arith.constant 0 : index
    %28 = vector.load %arg10[%c0_22, %c0_23] : memref<8x12xf32, #tpu.memory_space<vmem>>, vector<8x12xf32>
    tpu.vector_store %arg10[%c0_22, %c0_23], %27 {strides = array<i32>} : memref<8x12xf32, #tpu.memory_space<vmem>>, vector<8x12xf32>,
    return
  }
  func.func @transform_0(%arg0: i32) -> (i32, i32) {
    %c0_i32 = arith.constant 0 : i32
    %c0_i32_0 = arith.constant 0 : i32
    return %arg0, %c0_i32 : i32, i32
  }
  func.func @transform_1(%arg0: i32) -> (i32, i32) {
    %c0_i32 = arith.constant 0 : i32
    %c0_i32_0 = arith.constant 0 : i32
    return %arg0, %c0_i32 : i32, i32
  }
  func.func @transform_2(%arg0: i32) -> (i32, i32) {
    %c0_i32 = arith.constant 0 : i32
    %c0_i32_0 = arith.constant 0 : i32
    %c0_i32_1 = arith.constant 0 : i32
    return %c0_i32, %c0_i32_0 : i32, i32
  }
  func.func @transform_3(%arg0: i32) -> (i32, i32) {
    %c0_i32 = arith.constant 0 : i32
    %c0_i32_0 = arith.constant 0 : i32
    %c0_i32_1 = arith.constant 0 : i32
    return %c0_i32, %c0_i32_0 : i32, i32
  }
  func.func @transform_4(%arg0: i32) -> (i32, i32) {
    %c0_i32 = arith.constant 0 : i32
    %c0_i32_0 = arith.constant 0 : i32
    %c0_i32_1 = arith.constant 0 : i32
    return %c0_i32, %c0_i32_0 : i32, i32
  }
  func.func @transform_5(%arg0: i32) -> (i32, i32) {
    %c0_i32 = arith.constant 0 : i32
    %c0_i32_0 = arith.constant 0 : i32
    %c0_i32_1 = arith.constant 0 : i32
    return %c0_i32, %c0_i32_0 : i32, i32
  }
  func.func @transform_6(%arg0: i32) -> (i32, i32) {
    %c0_i32 = arith.constant 0 : i32
    %c0_i32_0 = arith.constant 0 : i32
    %c0_i32_1 = arith.constant 0 : i32
    return %c0_i32, %c0_i32_0 : i32, i32
  }
  func.func @transform_7(%arg0: i32) -> (i32, i32) {
    %c0_i32 = arith.constant 0 : i32
    %c0_i32_0 = arith.constant 0 : i32
    %c0_i32_1 = arith.constant 0 : i32
    return %c0_i32, %c0_i32_0 : i32, i32
  }
  func.func @transform_8(%arg0: i32) -> (i32, i32) {
    %c0_i32 = arith.constant 0 : i32
    %c0_i32_0 = arith.constant 0 : i32
    %c0_i32_1 = arith.constant 0 : i32
    return %c0_i32, %c0_i32_0 : i32, i32
  }
  func.func @transform_9(%arg0: i32) -> (i32, i32) {
    %c0_i32 = arith.constant 0 : i32
    %c0_i32_0 = arith.constant 0 : i32
    return %arg0, %c0_i32 : i32, i32
  }
}

</mosaic_0001>

<llo_original>
// kernel: dynamics_net_mlp_forward.1
$region0: #{dynamics_net_mlp_forward.1}
  #allocation0 [shape = 'u32[]', space=smem, size = 0x4, offset = 0x4, fixed_abs, tag = 'smem constant byte address 0x4 - core index']
  #allocation1 [shape = 'u32[144,128]{1,0:T(1,128)}', space=vmem, size = 0x12000, scoped, tag = 'internal scratch']
  %s0 = inlined_call_operand.vmem [shape: f32[16,12], index: 0, kind: input, shape index: {}]
  %s1 = inlined_call_operand.vmem [shape: f32[16,4], index: 1, kind: input, shape index: {}]
  %s2 = inlined_call_operand.vmem [shape: bf16[12,64], index: 2, kind: input, shape index: {}]
  %s3 = inlined_call_operand.vmem [shape: bf16[4,64], index: 3, kind: input, shape index: {}]
  %s4 = inlined_call_operand.vmem [shape: f32[1,64], index: 4, kind: input, shape index: {}]
  %s5 = inlined_call_operand.vmem [shape: bf16[64,64], index: 5, kind: input, shape index: {}]
  %s6 = inlined_call_operand.vmem [shape: f32[1,64], index: 6, kind: input, shape index: {}]
  %s7 = inlined_call_operand.vmem [shape: bf16[64,12], index: 7, kind: input, shape index: {}]
  %s8 = inlined_call_operand.vmem [shape: f32[1,12], index: 8, kind: input, shape index: {}]
  %s9 = inlined_call_operand.hbm [shape: f32[16,12], index: 9, kind: output, shape index: {}]
  %s10 = sld [smem:[#allocation0]]
  $region69: #{dynamics_net_mlp_forward.1} parent=0
    _
  %s12 = ssub.s32 1, %s10
  %s13 = scalar_select 0, %s12, %s10
  $region1: #{dynamics_net_mlp_forward.1} parent=0
    #allocation2 [shape = 'u8[8192]{0}', space=vmem, size = 0x2000, scoped, tag = 'output window, operand 0']
    #allocation3 [shape = 's32[2]{0}', space=sflag, size = 0x8, scoped, tag = 'scoped memory for dynamics_net_mlp_forward.1']
    %14 = vsyncpa [#allocation3], 0
    %s15 = scalar_lea.sflag [#allocation3], 1
    %16 = vsyncpa %s15, 0
    loop: start=0, step=1, limit=4
    $region2: #{dynamics_net_mlp_forward.1} parent=1 // loop_pre_header
      _
    $region3: #{dynamics_net_mlp_forward.1} parent=1 // loop_header
      %s18 = sphi 0, %s22
      %p19 = scmp.ge.s32.totalorder %s18, 4
      %s28 = sphi 0, %s30
      %s31 = sphi 0, %s28
      %s32 = sphi 0, %s31
      %s48 = sphi 0, %s32
      %s54 = sphi 0, %s56
      %s57 = sphi 0, %s54
      %s58 = sphi 0, %s57
      %s74 = sphi 0, %s58
      %s78 = sphi 0, %s78
      %s80 = sphi 0, %s78
      %s81 = sphi 0, %s80
      %s95 = sphi 0, %s81
      %s99 = sphi 0, %s99
      %s101 = sphi 0, %s99
      %s102 = sphi 0, %s101
      %s116 = sphi 0, %s102
      %s120 = sphi 0, %s120
      %s122 = sphi 0, %s120
      %s123 = sphi 0, %s122
      %s137 = sphi 0, %s123
      %s141 = sphi 0, %s141
      %s143 = sphi 0, %s141
      %s144 = sphi 0, %s143
      %s158 = sphi 0, %s144
      %s162 = sphi 0, %s162
      %s164 = sphi 0, %s162
      %s165 = sphi 0, %s164
      %s179 = sphi 0, %s165
      %s183 = sphi 0, %s183
      %s185 = sphi 0, %s183
      %s186 = sphi 0, %s185
      %s200 = sphi 0, %s186
      %s204 = sphi 0, %s204
      %s206 = sphi 0, %s204
      %s207 = sphi 0, %s206
      %s221 = sphi 0, %s207
      %s227 = sphi 0, %s229
      %s230 = sphi 0, %s227
      %s231 = sphi 0, %s230
      %s247 = sphi 0, %s231
    $region4: #{dynamics_net_mlp_forward.1} parent=1 // loop_header_branch
      %21 = sbr.rel (%p19) target = $region8
    $region5: #{dynamics_net_mlp_forward.1} parent=1 // loop_body
      %s23 = ssub.s32 %s18, 1
      %s24 = ssub.s32 %s18, 2
      %s25 = sadd.s32 %s18, 1
      %s26 = ssub.s32 %s18, %s25
      %p27 = scmp.eq.s32.totalorder %s26, 0
      %s29 = sadd.s32 %s28, 1
      %s30 = scalar_select %p27, %s28, %s29
      %p33 = pneg %p27
      %p34 = scmp.eq.s32.totalorder %s18, 1
      %p35 = por %p33, %p34
      %p36 = scmp.ne.s32.totalorder %s28, %s31
      %p37 = scmp.eq.s32.totalorder %s18, 0
      %p38 = por %p36, %p37
      %p39 = scmp.ne.s32.totalorder %s28, %s31
      %p40 = scmp.eq.s32.totalorder %s23, 1
      %p41 = por %p39, %p40
      %p42 = scmp.ne.s32.totalorder %s31, %s32
      %p43 = scmp.eq.s32.totalorder %s23, 0
      %p44 = por %p42, %p43
      %p45 = scmp.ne.s32.totalorder %s31, %s32
      %p46 = scmp.eq.s32.totalorder %s24, 1
      %p47 = por %p45, %p46
      %p49 = scmp.ne.s32.totalorder %s32, %s48
      %p50 = scmp.eq.s32.totalorder %s24, 0
      %p51 = por %p49, %p50
      %s52 = ssub.s32 %s18, %s25
      %p53 = scmp.eq.s32.totalorder %s52, 0
      %s55 = sadd.s32 %s54, 1
      %s56 = scalar_select %p53, %s54, %s55
      %p59 = pneg %p53
      %p60 = scmp.eq.s32.totalorder %s18, 1
      %p61 = por %p59, %p60
      %p62 = scmp.ne.s32.totalorder %s54, %s57
      %p63 = scmp.eq.s32.totalorder %s18, 0
      %p64 = por %p62, %p63
      %p65 = scmp.ne.s32.totalorder %s54, %s57
      %p66 = scmp.eq.s32.totalorder %s23, 1
      %p67 = por %p65, %p66
      %p68 = scmp.ne.s32.totalorder %s57, %s58
      %p69 = scmp.eq.s32.totalorder %s23, 0
      %p70 = por %p68, %p69
      %p71 = scmp.ne.s32.totalorder %s57, %s58
      %p72 = scmp.eq.s32.totalorder %s24, 1
      %p73 = por %p71, %p72
      %p75 = scmp.ne.s32.totalorder %s58, %s74
      %p76 = scmp.eq.s32.totalorder %s24, 0
      %p77 = por %p75, %p76
      %s79 = sadd.s32 %s78, 1
      %p82 = scmp.eq.s32.totalorder %s18, 1
      %p83 = scmp.ne.s32.totalorder %s78, %s80
      %p84 = scmp.eq.s32.totalorder %s18, 0
      %p85 = por %p83, %p84
      %p86 = scmp.ne.s32.totalorder %s78, %s80
      %p87 = scmp.eq.s32.totalorder %s23, 1
      %p88 = por %p86, %p87
      %p89 = scmp.ne.s32.totalorder %s80, %s81
      %p90 = scmp.eq.s32.totalorder %s23, 0
      %p91 = por %p89, %p90
      %p92 = scmp.ne.s32.totalorder %s80, %s81
      %p93 = scmp.eq.s32.totalorder %s24, 1
      %p94 = por %p92, %p93
      %p96 = scmp.ne.s32.totalorder %s81, %s95
      %p97 = scmp.eq.s32.totalorder %s24, 0
      %p98 = por %p96, %p97
      %s100 = sadd.s32 %s99, 1
      %p103 = scmp.eq.s32.totalorder %s18, 1
      %p104 = scmp.ne.s32.totalorder %s99, %s101
      %p105 = scmp.eq.s32.totalorder %s18, 0
      %p106 = por %p104, %p105
      %p107 = scmp.ne.s32.totalorder %s99, %s101
      %p108 = scmp.eq.s32.totalorder %s23, 1
      %p109 = por %p107, %p108
      %p110 = scmp.ne.s32.totalorder %s101, %s102
      %p111 = scmp.eq.s32.totalorder %s23, 0
      %p112 = por %p110, %p111
      %p113 = scmp.ne.s32.totalorder %s101, %s102
      %p114 = scmp.eq.s32.totalorder %s24, 1
      %p115 = por %p113, %p114
      %p117 = scmp.ne.s32.totalorder %s102, %s116
      %p118 = scmp.eq.s32.totalorder %s24, 0
      %p119 = por %p117, %p118
      %s121 = sadd.s32 %s120, 1
      %p124 = scmp.eq.s32.totalorder %s18, 1
      %p125 = scmp.ne.s32.totalorder %s120, %s122
      %p126 = scmp.eq.s32.totalorder %s18, 0
      %p127 = por %p125, %p126
      %p128 = scmp.ne.s32.totalorder %s120, %s122
      %p129 = scmp.eq.s32.totalorder %s23, 1
      %p130 = por %p128, %p129
      %p131 = scmp.ne.s32.totalorder %s122, %s123
      %p132 = scmp.eq.s32.totalorder %s23, 0
      %p133 = por %p131, %p132
      %p134 = scmp.ne.s32.totalorder %s122, %s123
      %p135 = scmp.eq.s32.totalorder %s24, 1
      %p136 = por %p134, %p135
      %p138 = scmp.ne.s32.totalorder %s123, %s137
      %p139 = scmp.eq.s32.totalorder %s24, 0
      %p140 = por %p138, %p139
      %s142 = sadd.s32 %s141, 1
      %p145 = scmp.eq.s32.totalorder %s18, 1
      %p146 = scmp.ne.s32.totalorder %s141, %s143
      %p147 = scmp.eq.s32.totalorder %s18, 0
      %p148 = por %p146, %p147
      %p149 = scmp.ne.s32.totalorder %s141, %s143
      %p150 = scmp.eq.s32.totalorder %s23, 1
      %p151 = por %p149, %p150
      %p152 = scmp.ne.s32.totalorder %s143, %s144
      %p153 = scmp.eq.s32.totalorder %s23, 0
      %p154 = por %p152, %p153
      %p155 = scmp.ne.s32.totalorder %s143, %s144
      %p156 = scmp.eq.s32.totalorder %s24, 1
      %p157 = por %p155, %p156
      %p159 = scmp.ne.s32.totalorder %s144, %s158
      %p160 = scmp.eq.s32.totalorder %s24, 0
      %p161 = por %p159, %p160
      %s163 = sadd.s32 %s162, 1
      %p166 = scmp.eq.s32.totalorder %s18, 1
      %p167 = scmp.ne.s32.totalorder %s162, %s164
      %p168 = scmp.eq.s32.totalorder %s18, 0
      %p169 = por %p167, %p168
      %p170 = scmp.ne.s32.totalorder %s162, %s164
      %p171 = scmp.eq.s32.totalorder %s23, 1
      %p172 = por %p170, %p171
      %p173 = scmp.ne.s32.totalorder %s164, %s165
      %p174 = scmp.eq.s32.totalorder %s23, 0
      %p175 = por %p173, %p174
      %p176 = scmp.ne.s32.totalorder %s164, %s165
      %p177 = scmp.eq.s32.totalorder %s24, 1
      %p178 = por %p176, %p177
      %p180 = scmp.ne.s32.totalorder %s165, %s179
      %p181 = scmp.eq.s32.totalorder %s24, 0
      %p182 = por %p180, %p181
      %s184 = sadd.s32 %s183, 1
      %p187 = scmp.eq.s32.totalorder %s18, 1
      %p188 = scmp.ne.s32.totalorder %s183, %s185
      %p189 = scmp.eq.s32.totalorder %s18, 0
      %p190 = por %p188, %p189
      %p191 = scmp.ne.s32.totalorder %s183, %s185
      %p192 = scmp.eq.s32.totalorder %s23, 1
      %p193 = por %p191, %p192
      %p194 = scmp.ne.s32.totalorder %s185, %s186
      %p195 = scmp.eq.s32.totalorder %s23, 0
      %p196 = por %p194, %p195
      %p197 = scmp.ne.s32.totalorder %s185, %s186
      %p198 = scmp.eq.s32.totalorder %s24, 1
      %p199 = por %p197, %p198
      %p201 = scmp.ne.s32.totalorder %s186, %s200
      %p202 = scmp.eq.s32.totalorder %s24, 0
      %p203 = por %p201, %p202
      %s205 = sadd.s32 %s204, 1
      %p208 = scmp.eq.s32.totalorder %s18, 1
      %p209 = scmp.ne.s32.totalorder %s204, %s206
      %p210 = scmp.eq.s32.totalorder %s18, 0
      %p211 = por %p209, %p210
      %p212 = scmp.ne.s32.totalorder %s204, %s206
      %p213 = scmp.eq.s32.totalorder %s23, 1
      %p214 = por %p212, %p213
      %p215 = scmp.ne.s32.totalorder %s206, %s207
      %p216 = scmp.eq.s32.totalorder %s23, 0
      %p217 = por %p215, %p216
      %p218 = scmp.ne.s32.totalorder %s206, %s207
      %p219 = scmp.eq.s32.totalorder %s24, 1
      %p220 = por %p218, %p219
      %p222 = scmp.ne.s32.totalorder %s207, %s221
      %p223 = scmp.eq.s32.totalorder %s24, 0
      %p224 = por %p222, %p223
      %s225 = ssub.s32 %s18, %s25
      %p226 = scmp.eq.s32.totalorder %s225, 0
      %s228 = sadd.s32 %s227, 1
      %s229 = scalar_select %p226, %s227, %s228
      %p232 = pneg %p226
      %p233 = scmp.eq.s32.totalorder %s18, 1
      %p234 = por %p232, %p233
      %p235 = scmp.ne.s32.totalorder %s227, %s230
      %p236 = scmp.eq.s32.totalorder %s18, 0
      %p237 = por %p235, %p236
      %p238 = scmp.ne.s32.totalorder %s227, %s230
      %p239 = scmp.eq.s32.totalorder %s23, 1
      %p240 = por %p238, %p239
      %p241 = scmp.ne.s32.totalorder %s230, %s231
      %p242 = scmp.eq.s32.totalorder %s23, 0
      %p243 = por %p241, %p242
      %p244 = scmp.ne.s32.totalorder %s230, %s231
      %p245 = scmp.eq.s32.totalorder %s24, 1
      %p246 = por %p244, %p245
      %p248 = scmp.ne.s32.totalorder %s231, %s247
      %p249 = scmp.eq.s32.totalorder %s24, 0
      %p250 = por %p248, %p249
      %p251 = scmp.le.s32.totalorder 1, %s18
      %p252 = scmp.lt.s32.totalorder %s18, 3
      %p253 = pnand %p251, %p252
      %p254 = pneg %p253
      // Predicated region
      $region9: #{dynamics_net_mlp_forward.1} parent=5 // pred_check
        _
      $region10: #{dynamics_net_mlp_forward.1} parent=5 // pred_check_branch
        %256 = sbr.rel (%p253) target = $region12
      $region11: #{dynamics_net_mlp_forward.1} parent=5 // pred_region
        %s257 = ssub.s32 %s18, 1
        // Predicated region
        $region13: #{dynamics_net_mlp_forward.1} parent=11 // pred_check
          %p258 = pneg %p91
        $region14: #{dynamics_net_mlp_forward.1} parent=11 // pred_check_branch
          %260 = sbr.rel (%p258) target = $region16
        $region15: #{dynamics_net_mlp_forward.1} parent=11 // pred_region
          _
        $region16: #{dynamics_net_mlp_forward.1} parent=11 // pred_fallthru
          _
        // Predicated region
        $region17: #{dynamics_net_mlp_forward.1} parent=11 // pred_check
          %p261 = pneg %p112
        $region18: #{dynamics_net_mlp_forward.1} parent=11 // pred_check_branch
          %263 = sbr.rel (%p261) target = $region20
        $region19: #{dynamics_net_mlp_forward.1} parent=11 // pred_region
          _
        $region20: #{dynamics_net_mlp_forward.1} parent=11 // pred_fallthru
          _
        // Predicated region
        $region21: #{dynamics_net_mlp_forward.1} parent=11 // pred_check
          %p264 = pneg %p133
        $region22: #{dynamics_net_mlp_forward.1} parent=11 // pred_check_branch
          %266 = sbr.rel (%p264) target = $region24
        $region23: #{dynamics_net_mlp_forward.1} parent=11 // pred_region
          _
        $region24: #{dynamics_net_mlp_forward.1} parent=11 // pred_fallthru
          _
        // Predicated region
        $region25: #{dynamics_net_mlp_forward.1} parent=11 // pred_check
          %p267 = pneg %p154
        $region26: #{dynamics_net_mlp_forward.1} parent=11 // pred_check_branch
          %269 = sbr.rel (%p267) target = $region28
        $region27: #{dynamics_net_mlp_forward.1} parent=11 // pred_region
          _
        $region28: #{dynamics_net_mlp_forward.1} parent=11 // pred_fallthru
          _
        // Predicated region
        $region29: #{dynamics_net_mlp_forward.1} parent=11 // pred_check
          %p270 = pneg %p175
        $region30: #{dynamics_net_mlp_forward.1} parent=11 // pred_check_branch
          %272 = sbr.rel (%p270) target = $region32
        $region31: #{dynamics_net_mlp_forward.1} parent=11 // pred_region
          _
        $region32: #{dynamics_net_mlp_forward.1} parent=11 // pred_fallthru
          _
        // Predicated region
        $region33: #{dynamics_net_mlp_forward.1} parent=11 // pred_check
          %p273 = pneg %p196
        $region34: #{dynamics_net_mlp_forward.1} parent=11 // pred_check_branch
          %275 = sbr.rel (%p273) target = $region36
        $region35: #{dynamics_net_mlp_forward.1} parent=11 // pred_region
          _
        $region36: #{dynamics_net_mlp_forward.1} parent=11 // pred_fallthru
          _
        // Predicated region
        $region37: #{dynamics_net_mlp_forward.1} parent=11 // pred_check
          %p276 = pneg %p217
        $region38: #{dynamics_net_mlp_forward.1} parent=11 // pred_check_branch
          %278 = sbr.rel (%p276) target = $region40
        $region39: #{dynamics_net_mlp_forward.1} parent=11 // pred_region
          _
        $region40: #{dynamics_net_mlp_forward.1} parent=11 // pred_fallthru
          _
      $region12: #{dynamics_net_mlp_forward.1} parent=5 // pred_fallthru
        _
      %p279 = scmp.lt.s32.totalorder %s18, 2
      // Predicated region
      $region41: #{dynamics_net_mlp_forward.1} parent=5 // pred_check
        %p280 = pneg %p279
      $region42: #{dynamics_net_mlp_forward.1} parent=5 // pred_check_branch
        %282 = sbr.rel (%p280) target = $region44
      $region43: #{dynamics_net_mlp_forward.1} parent=5 // pred_region
        // Predicated region
        $region45: #{dynamics_net_mlp_forward.1} parent=43 // pred_check
          %p283 = pneg %p38
        $region46: #{dynamics_net_mlp_forward.1} parent=43 // pred_check_branch
          %285 = sbr.rel (%p283) target = $region48
        $region47: #{dynamics_net_mlp_forward.1} parent=43 // pred_region
          %p286 = scmp.lt.s32.totalorder %s18, 1
          %s287 = scalar_select %p286, %s18, 1
          %s288 = smul.addr %s287, 8
          %s289 = scalar_lea.vmem %s0, %s288
        $region48: #{dynamics_net_mlp_forward.1} parent=43 // pred_fallthru
          _
        // Predicated region
        $region49: #{dynamics_net_mlp_forward.1} parent=43 // pred_check
          %p290 = pneg %p64
        $region50: #{dynamics_net_mlp_forward.1} parent=43 // pred_check_branch
          %292 = sbr.rel (%p290) target = $region52
        $region51: #{dynamics_net_mlp_forward.1} parent=43 // pred_region
          %p293 = scmp.lt.s32.totalorder %s18, 1
          %s294 = scalar_select %p293, %s18, 1
          %s295 = smul.addr %s294, 8
          %s296 = scalar_lea.vmem %s1, %s295
        $region52: #{dynamics_net_mlp_forward.1} parent=43 // pred_fallthru
          _
      $region44: #{dynamics_net_mlp_forward.1} parent=5 // pred_fallthru
        _
      %p297 = scmp.le.s32.totalorder 1, %s18
      %p298 = scmp.lt.s32.totalorder %s18, 3
      %p299 = pnand %p297, %p298
      %p300 = pneg %p299
      // Predicated region
      $region53: #{dynamics_net_mlp_forward.1} parent=5 // pred_check
        _
      $region54: #{dynamics_net_mlp_forward.1} parent=5 // pred_check_branch
        %302 = sbr.rel (%p299) target = $region56
      $region55: #{dynamics_net_mlp_forward.1} parent=5 // pred_region
        %s303 = ssub.s32 %s18, 1
        %p304 = scmp.lt.s32.totalorder %s23, 1
        %s305 = scalar_select %p304, %s23, 1
        %s306 = smul.addr %s305, 8
        %s307 = scalar_lea.vmem %s0, %s306
        %p308 = pneg %p44
        %p309 = pneg %p41
        %p310 = scmp.lt.s32.totalorder %s23, 1
        %s311 = scalar_select %p310, %s23, 1
        %s312 = smul.addr %s311, 8
        %s313 = scalar_lea.vmem %s1, %s312
        %p314 = pneg %p70
        %p315 = pneg %p67
        %p316 = pneg %p91
        %p317 = pneg %p88
        %p318 = pneg %p112
        %p319 = pneg %p109
        %p320 = pneg %p133
        %p321 = pneg %p130
        %p322 = pneg %p154
        %p323 = pneg %p151
        %p324 = pneg %p175
        %p325 = pneg %p172
        %p326 = pneg %p196
        %p327 = pneg %p193
        %p328 = pneg %p217
        %p329 = pneg %p214
        %p330 = pneg %p243
        %p331 = pneg %p240
        %s332 = sand.u32 %s230, 1
        %s333 = scalar_lea.sflag [#allocation3], %s332
        %s334 = sand.u32 %s230, 1
        %s335 = smul.addr %s334, 8
        %s336 = scalar_lea.vmem [#allocation2], %s335
        %p337 = scmp.lt.s32.totalorder %s23, 1
        %s338 = scalar_select %p337, %s23, 1
        %s339 = smul.addr %s338, 8
        %s340 = scalar_lea.vmem %s0, %s339
        %p341 = scmp.lt.s32.totalorder %s23, 1
        %s342 = scalar_select %p341, %s23, 1
        %s343 = smul.addr %s342, 8
        %s344 = scalar_lea.vmem %s1, %s343
        %v346 = vld [vmem:[%s340] sm:$0xff]
        %v347 = vpack.c.bf16 %v346, %v346
        %v348 = vld [vmem:[%s344] sm:$0xff]
        %v349 = vpack.c.bf16 %v348, %v348
        %v350 = vld [vmem:[%s2] sm:$0xf]
        %v351 = vld [vmem:[%s2 + $0x4] sm:$0x3]
        %v352 = vld [vmem:[%s3] sm:$0x3]
        %vm353 = vcmask 31744
        %v355 = vsel %vm353, %v349, 0
        %vm357 = vcmask 1041408
        %v359 = vsel %vm357, %v352, 0
        %361 = vmatprep.subr.bf16.mxu0 0
        %362 = vmatpush1.bf16.msra.mxu0 %v359
        %363 = vmatprep.subr.bf16.mxu0 0
        %364 = vmatpush1.bf16.msra.mxu0 0
        %365 = vmatprep.subr.bf16.mxu0 0
        %366 = vmatpush1.bf16.msra.mxu0 0
        %367 = vmatprep.subr.bf16.mxu0 0
        %368 = vmatpush1.bf16.msra.mxu0 0
        %369 = vmatprep.subr.bf16.mxu0 0
        %370 = vmatpush1.bf16.msra.mxu0 0
        %371 = vmatprep.subr.bf16.mxu0 0
        %372 = vmatpush1.bf16.msra.mxu0 0
        %373 = vmatprep.subr.bf16.mxu0 0
        %374 = vmatpush1.bf16.msra.mxu0 0
        %375 = vmatprep.subr.bf16.mxu0 0
        %376 = vmatpush1.bf16.msra.mxu0 0
        %377 = vmatprep.subr.bf16.mxu0 0
        %378 = vmatpush1.bf16.msra.mxu0 0
        %379 = vmatprep.subr.bf16.mxu0 0
        %380 = vmatpush1.bf16.msra.mxu0 0
        %381 = vmatprep.subr.bf16.mxu0 0
        %382 = vmatpush1.bf16.msra.mxu0 0
        %383 = vmatprep.subr.bf16.mxu0 0
        %384 = vmatpush1.bf16.msra.mxu0 0
        %385 = vmatprep.subr.bf16.mxu0 0
        %386 = vmatpush1.bf16.msra.mxu0 0
        %387 = vmatprep.subr.bf16.mxu0 0
        %388 = vmatpush1.bf16.msra.mxu0 0
        %389 = vmatprep.subr.bf16.mxu0 0
        %390 = vmatpush1.bf16.msra.mxu0 0
        %391 = vmatprep.subr.bf16.mxu0 0
        %392 = vmatpush1.bf16.msra.mxu0 0
        %393 = vmatprep.mubr.bf16.mxu0 0
        %394 = vmatmul.mubr.bf16.gmra.mrb[0].mxu0 %v355
        %v395 = vpop.f32.mrb[0].mxu0
        %v396 = vadd.f32 0.0, %v395
        %v397 = vpop.f32.mrb[0].mxu0
        %v398 = vpop.f32.mrb[0].mxu0
        %v399 = vpop.f32.mrb[0].mxu0
        %400 = vdwg.mxu0
        %v403 = vunpack.c.l.b16 %v350
        %v404 = vunpack.c.l.b16 %v351
        %v405 = vpack.c.b16 %v404, %v403
        %vm406 = vcmask 97280
        %v408 = vsel %vm406, %v347, 0
        %vm410 = vcmask 1045504
        %v412 = vsel %vm410, %v405, 0
        %414 = vmatprep.subr.bf16.mxu0 0
        %415 = vmatpush1.bf16.msra.mxu0 %v412
        %416 = vmatprep.subr.bf16.mxu0 0
        %417 = vmatpush1.bf16.msra.mxu0 0
        %418 = vmatprep.subr.bf16.mxu0 0
        %419 = vmatpush1.bf16.msra.mxu0 0
        %420 = vmatprep.subr.bf16.mxu0 0
        %421 = vmatpush1.bf16.msra.mxu0 0
        %422 = vmatprep.subr.bf16.mxu0 0
        %423 = vmatpush1.bf16.msra.mxu0 0
        %424 = vmatprep.subr.bf16.mxu0 0
        %425 = vmatpush1.bf16.msra.mxu0 0
        %426 = vmatprep.subr.bf16.mxu0 0
        %427 = vmatpush1.bf16.msra.mxu0 0
        %428 = vmatprep.subr.bf16.mxu0 0
        %429 = vmatpush1.bf16.msra.mxu0 0
        %430 = vmatprep.subr.bf16.mxu0 0
        %431 = vmatpush1.bf16.msra.mxu0 0
        %432 = vmatprep.subr.bf16.mxu0 0
        %433 = vmatpush1.bf16.msra.mxu0 0
        %434 = vmatprep.subr.bf16.mxu0 0
        %435 = vmatpush1.bf16.msra.mxu0 0
        %436 = vmatprep.subr.bf16.mxu0 0
        %437 = vmatpush1.bf16.msra.mxu0 0
        %438 = vmatprep.subr.bf16.mxu0 0
        %439 = vmatpush1.bf16.msra.mxu0 0
        %440 = vmatprep.subr.bf16.mxu0 0
        %441 = vmatpush1.bf16.msra.mxu0 0
        %442 = vmatprep.subr.bf16.mxu0 0
        %443 = vmatpush1.bf16.msra.mxu0 0
        %444 = vmatprep.subr.bf16.mxu0 0
        %445 = vmatpush1.bf16.msra.mxu0 0
        %446 = vmatprep.mubr.bf16.mxu0 0
        %447 = vmatmul.mubr.bf16.gmra.mrb[0].mxu0 %v408
        %v448 = vpop.f32.mrb[0].mxu0
        %v449 = vadd.f32 %v396, %v448
        %v450 = vpop.f32.mrb[0].mxu0
        %v451 = vpop.f32.mrb[0].mxu0
        %v452 = vpop.f32.mrb[0].mxu0
        %453 = vdwg.mxu0
        %v454 = vld [vmem:[%s4] sm:$0x1]
        %v456 = vlaneseq
        %v457 = vshrl.u32 %v456, 7
        %v458 = vsub.s32 0, %v457
        %v459 = vrot.slane %v454, %v458
        %v461 = vadd.f32 %v449, %v459
        %v462 = vmax.f32 %v461, 0.0
        %v463 = vpack.c.bf16 %v462, %v462
        %v464 = vld [vmem:[%s5] sm:$0xf]
        %v465 = vld [vmem:[%s5 + $0x4] sm:$0xf]
        %v466 = vld [vmem:[%s5 + $0x8] sm:$0xf]
        %v467 = vld [vmem:[%s5 + $0xc] sm:$0xf]
        %v468 = vld [vmem:[%s5 + $0x10] sm:$0xf]
        %v469 = vld [vmem:[%s5 + $0x14] sm:$0xf]
        %v470 = vld [vmem:[%s5 + $0x18] sm:$0xf]
        %v471 = vld [vmem:[%s5 + $0x1c] sm:$0xf]
        %v472 = vld [vmem:[%s6] sm:$0x1]
        %v474 = vlaneseq
        %v475 = vshrl.u32 %v474, 7
        %v476 = vsub.s32 0, %v475
        %v477 = vrot.slane %v472, %v476
        %v487 = vunpack.c.l.b16 %v464
        %v488 = vunpack.c.l.b16 %v465
        %v489 = vunpack.c.l.b16 %v466
        %v490 = vunpack.c.l.b16 %v467
        %v491 = vunpack.c.l.b16 %v468
        %v492 = vunpack.c.l.b16 %v469
        %v493 = vunpack.c.l.b16 %v470
        %v494 = vunpack.c.l.b16 %v471
        %v495 = vpack.c.b16 %v488, %v487
        %v496 = vpack.c.b16 %v490, %v489
        %v497 = vpack.c.b16 %v492, %v491
        %v498 = vpack.c.b16 %v494, %v493
        %vm503 = vcmask 523264
        %v505 = vsel %vm503, %v463, 0
        %507 = vmatprep.subr.bf16.mxu0 0
        %508 = vmatpush1.bf16.msra.mxu0 %v495
        %509 = vmatprep.subr.bf16.mxu0 0
        %510 = vmatpush1.bf16.msra.mxu0 %v496
        %511 = vmatprep.subr.bf16.mxu0 0
        %512 = vmatpush1.bf16.msra.mxu0 %v497
        %513 = vmatprep.subr.bf16.mxu0 0
        %514 = vmatpush1.bf16.msra.mxu0 %v498
        %515 = vmatprep.subr.bf16.mxu0 0
        %516 = vmatpush1.bf16.msra.mxu0 0
        %517 = vmatprep.subr.bf16.mxu0 0
        %518 = vmatpush1.bf16.msra.mxu0 0
        %519 = vmatprep.subr.bf16.mxu0 0
        %520 = vmatpush1.bf16.msra.mxu0 0
        %521 = vmatprep.subr.bf16.mxu0 0
        %522 = vmatpush1.bf16.msra.mxu0 0
        %523 = vmatprep.subr.bf16.mxu0 0
        %524 = vmatpush1.bf16.msra.mxu0 0
        %525 = vmatprep.subr.bf16.mxu0 0
        %526 = vmatpush1.bf16.msra.mxu0 0
        %527 = vmatprep.subr.bf16.mxu0 0
        %528 = vmatpush1.bf16.msra.mxu0 0
        %529 = vmatprep.subr.bf16.mxu0 0
        %530 = vmatpush1.bf16.msra.mxu0 0
        %531 = vmatprep.subr.bf16.mxu0 0
        %532 = vmatpush1.bf16.msra.mxu0 0
        %533 = vmatprep.subr.bf16.mxu0 0
        %534 = vmatpush1.bf16.msra.mxu0 0
        %535 = vmatprep.subr.bf16.mxu0 0
        %536 = vmatpush1.bf16.msra.mxu0 0
        %537 = vmatprep.subr.bf16.mxu0 0
        %538 = vmatpush1.bf16.msra.mxu0 0
        %539 = vmatprep.mubr.bf16.mxu0 0
        %540 = vmatmul.mubr.bf16.gmra.mrb[0].mxu0 %v505
        %v541 = vpop.f32.mrb[0].mxu0
        %v542 = vadd.f32 %v477, %v541
        %v543 = vpop.f32.mrb[0].mxu0
        %v544 = vpop.f32.mrb[0].mxu0
        %v545 = vpop.f32.mrb[0].mxu0
        %546 = vdwg.mxu0
        %v547 = vmax.f32 %v542, 0.0
        %v548 = vpack.c.bf16 %v547, %v547
        %v549 = vld [vmem:[%s7] sm:$0xf]
        %v550 = vld [vmem:[%s7 + $0x4] sm:$0xf]
        %v551 = vld [vmem:[%s7 + $0x8] sm:$0xf]
        %v552 = vld [vmem:[%s7 + $0xc] sm:$0xf]
        %v553 = vld [vmem:[%s7 + $0x10] sm:$0xf]
        %v554 = vld [vmem:[%s7 + $0x14] sm:$0xf]
        %v555 = vld [vmem:[%s7 + $0x18] sm:$0xf]
        %v556 = vld [vmem:[%s7 + $0x1c] sm:$0xf]
        %v557 = vld [vmem:[%s8] sm:$0x1]
        %v559 = vlaneseq
        %v560 = vshrl.u32 %v559, 7
        %v561 = vsub.s32 0, %v560
        %v562 = vrot.slane %v557, %v561
        %v572 = vunpack.c.l.b16 %v549
        %v573 = vunpack.c.l.b16 %v550
        %v574 = vunpack.c.l.b16 %v551
        %v575 = vunpack.c.l.b16 %v552
        %v576 = vunpack.c.l.b16 %v553
        %v577 = vunpack.c.l.b16 %v554
        %v578 = vunpack.c.l.b16 %v555
        %v579 = vunpack.c.l.b16 %v556
        %v580 = vpack.c.b16 %v573, %v572
        %v581 = vpack.c.b16 %v575, %v574
        %v582 = vpack.c.b16 %v577, %v576
        %v583 = vpack.c.b16 %v579, %v578
        %v589 = vsel %vm503, %v548, 0
        %591 = vmatprep.subr.bf16.mxu0 0
        %592 = vmatpush1.bf16.msra.mxu0 %v580
        %593 = vmatprep.subr.bf16.mxu0 0
        %594 = vmatpush1.bf16.msra.mxu0 %v581
        %595 = vmatprep.subr.bf16.mxu0 0
        %596 = vmatpush1.bf16.msra.mxu0 %v582
        %597 = vmatprep.subr.bf16.mxu0 0
        %598 = vmatpush1.bf16.msra.mxu0 %v583
        %599 = vmatprep.subr.bf16.mxu0 0
        %600 = vmatpush1.bf16.msra.mxu0 0
        %601 = vmatprep.subr.bf16.mxu0 0
        %602 = vmatpush1.bf16.msra.mxu0 0
        %603 = vmatprep.subr.bf16.mxu0 0
        %604 = vmatpush1.bf16.msra.mxu0 0
        %605 = vmatprep.subr.bf16.mxu0 0
        %606 = vmatpush1.bf16.msra.mxu0 0
        %607 = vmatprep.subr.bf16.mxu0 0
        %608 = vmatpush1.bf16.msra.mxu0 0
        %609 = vmatprep.subr.bf16.mxu0 0
        %610 = vmatpush1.bf16.msra.mxu0 0
        %611 = vmatprep.subr.bf16.mxu0 0
        %612 = vmatpush1.bf16.msra.mxu0 0
        %613 = vmatprep.subr.bf16.mxu0 0
        %614 = vmatpush1.bf16.msra.mxu0 0
        %615 = vmatprep.subr.bf16.mxu0 0
        %616 = vmatpush1.bf16.msra.mxu0 0
        %617 = vmatprep.subr.bf16.mxu0 0
        %618 = vmatpush1.bf16.msra.mxu0 0
        %619 = vmatprep.subr.bf16.mxu0 0
        %620 = vmatpush1.bf16.msra.mxu0 0
        %621 = vmatprep.subr.bf16.mxu0 0
        %622 = vmatpush1.bf16.msra.mxu0 0
        %623 = vmatprep.mubr.bf16.mxu0 0
        %624 = vmatmul.mubr.bf16.gmra.mrb[0].mxu0 %v589
        %v625 = vpop.f32.mrb[0].mxu0
        %v626 = vadd.f32 %v562, %v625
        %v627 = vpop.f32.mrb[0].mxu0
        %v628 = vpop.f32.mrb[0].mxu0
        %v629 = vpop.f32.mrb[0].mxu0
        %630 = vdwg.mxu0
        %631 = vst.msk [vmem:[%s336] sm:$0xff] %vm406, %v626
        %s632 = sand.u32 %s230, 1
        %s633 = scalar_lea.sflag [#allocation3], %s632
        %s634 = sand.u32 %s230, 1
        %s635 = smul.addr %s634, 8
        %s636 = scalar_lea.vmem [#allocation2], %s635
        // Predicated region
        $region57: #{dynamics_net_mlp_forward.1} parent=55 // pred_check
          %p637 = pneg %p240
        $region58: #{dynamics_net_mlp_forward.1} parent=55 // pred_check_branch
          %639 = sbr.rel (%p637) target = $region60
        $region59: #{dynamics_net_mlp_forward.1} parent=55 // pred_region
          %s641 = ssub.s32 128, 128
          %642 = vsyncadd %s633, %s641
          %s643 = smul.addr %s23, 128
          %s644 = scalar_lea.hbm %s9, %s643
          %s646 = sshll.u32 %s636, 4
          %s647 = int_to_ptr.vmem [resolvable:$true] %s646
          %649 = dma.vmem_to_hbm [thread:$0]  %s647, 128, %s644, %s633
        $region60: #{dynamics_net_mlp_forward.1} parent=55 // pred_fallthru
          _
      $region56: #{dynamics_net_mlp_forward.1} parent=5 // pred_fallthru
        _
      %p650 = scmp.le.s32.totalorder 2, %s18
      // Predicated region
      $region61: #{dynamics_net_mlp_forward.1} parent=5 // pred_check
        %p651 = pneg %p650
      $region62: #{dynamics_net_mlp_forward.1} parent=5 // pred_check_branch
        %653 = sbr.rel (%p651) target = $region64
      $region63: #{dynamics_net_mlp_forward.1} parent=5 // pred_region
        %s654 = ssub.s32 %s18, 2
        // Predicated region
        $region65: #{dynamics_net_mlp_forward.1} parent=63 // pred_check
          %p655 = pneg %p246
        $region66: #{dynamics_net_mlp_forward.1} parent=63 // pred_check_branch
          %657 = sbr.rel (%p655) target = $region68
        $region67: #{dynamics_net_mlp_forward.1} parent=63 // pred_region
          %s658 = sand.u32 %s231, 1
          %s659 = scalar_lea.sflag [#allocation3], %s658
          %s660 = sand.u32 %s231, 1
          %s661 = smul.addr %s660, 8
          %s662 = scalar_lea.vmem [#allocation2], %s661
          %663 = dma.done %s659, 128
        $region68: #{dynamics_net_mlp_forward.1} parent=63 // pred_fallthru
          _
      $region64: #{dynamics_net_mlp_forward.1} parent=5 // pred_fallthru
        _
    $region6: #{dynamics_net_mlp_forward.1} parent=1 // loop_footer
      %s22 = sadd.s32 1, %s18
    $region7: #{dynamics_net_mlp_forward.1} parent=1 // loop_footer_branch
      %17 = sbr.rel target = $region3
    $region8: #{dynamics_net_mlp_forward.1} parent=1 // loop_exit
      _
    %664 = vsyncpa [#allocation3], 1
    %s665 = scalar_lea.sflag [#allocation3], 1
    %666 = vsyncpa %s665, 1

</llo_original>
